<compile_context>
chip_gen: v5e
topology: v5e:2x2
jax: 0.10.0
libtpu: 0.0.40
codegen_flags: <defaults>
</compile_context>

<pallas_src>
import math

import jax
import jax.numpy as jnp
from jax.experimental import pallas as pl
from jax.experimental.pallas import tpu as pltpu

# ---------------- configuration (small, shape-consistent with the module) ----------------
B = 64         # batch (becomes the "batch" dim N of the seq-len-1 MHA)
TB = 16        # batch tile per grid step  -> grid = (B // TB,) = (4,)
S = 16         # token sequence length fed to the PLM stand-in
VOCAB = 256    # vocab of the PLM stand-in embedding table
DE = 64        # embedding dim of the PLM stand-in
E = 128        # hidden_size (module default)
H = 8          # num_heads
DH = E // H    # head_dim = 16
OUT_PAD = 128  # fc output padded to a full lane group

# Row offsets inside the packed [320, 128] bf16 weight slab (all multiples of 16 = bf16 tile).
R_CLS0, R_CLS1 = 0, DE                  # PLM head        [DE, E]
R_V0, R_V1 = DE, DE + E                 # v_proj          [E, E]
R_OFC0, R_OFC1 = DE + E, DE + 2 * E     # out_proj @ fc   [E, 128] (only column 0 real)
W_ROWS = DE + 2 * E                     # 320


def sts_kernel(ids_ref, emb_ref, w_ref, b_ref, out_ref):
    # ---- fused PLM stand-in: embedding gather + mean-pool via one-hot counts @ table ----
    # counts[b, v] = #{s : ids[b, s] == v}; pooled = counts @ (emb_table / S)  (exact gather:
    # the one-hot/count entries are small integers, products/accumulation are f32-exact).
    ids = ids_ref[...]                                          # [TB, S] int32
    iota_v = jax.lax.broadcasted_iota(jnp.int32, (TB, VOCAB), 1)
    counts = jnp.zeros((TB, VOCAB), jnp.float32)
    for s in range(S):                                          # static unroll (S = 16)
        counts += (ids[:, s:s + 1] == iota_v).astype(jnp.float32)
    pooled = jnp.dot(counts.astype(jnp.bfloat16), emb_ref[...],
                     preferred_element_type=jnp.float32)        # [TB, DE], already / S

    b_all = b_ref[...]                                          # [8, 128] f32 (packed biases)
    b_cls, b_v, b_ofc = b_all[0:1], b_all[1:2], b_all[2:3]

    # ---- PLM classification head -> "logits" [TB, E] ----
    logits = jnp.dot(pooled.astype(jnp.bfloat16), w_ref[R_CLS0:R_CLS1, :],
                     preferred_element_type=jnp.float32) + b_cls

    # ---- nn.MultiheadAttention(E, H) with seq_len == 1 ----
    # softmax over the single key position == 1.0, so attention == out_proj(v_proj(logits));
    # q/k/softmax are dead.  out_proj and fc are pre-composed into one [E, 128] weight.
    v = jnp.dot(logits.astype(jnp.bfloat16), w_ref[R_V0:R_V1, :],
                preferred_element_type=jnp.float32) + b_v

    # ---- (out_proj ∘ fc): Linear(E,1) zero-padded to 128 output lanes (lane-dense store) ----
    out_ref[...] = jnp.dot(v.astype(jnp.bfloat16), w_ref[R_OFC0:R_OFC1, :],
                           preferred_element_type=jnp.float32) + b_ofc


def sts_forward_pallas(token_ids, emb_scaled, w_slab, b_slab):
    out_pad = pl.pallas_call(
        sts_kernel,
        out_shape=jax.ShapeDtypeStruct((B, OUT_PAD), jnp.float32),
        grid=(B // TB,),
        in_specs=[
            pl.BlockSpec((TB, S), lambda i: (i, 0)),              # token ids: tiled over batch
            pl.BlockSpec((VOCAB, DE), lambda i: (0, 0)),          # emb table: resident
            pl.BlockSpec((W_ROWS, OUT_PAD), lambda i: (0, 0)),    # weight slab: resident
            pl.BlockSpec((8, OUT_PAD), lambda i: (0, 0)),         # bias slab: resident
        ],
        out_specs=pl.BlockSpec((TB, OUT_PAD), lambda i: (i, 0)),
        compiler_params=pltpu.CompilerParams(
            dimension_semantics=("parallel",)),                   # v7x: shard tiles over 2 TCs
    )(token_ids, emb_scaled, w_slab, b_slab)
    return out_pad[:, :1]                                         # column 0 holds fc(.)


def sts_forward_reference(token_ids, emb_table, ref_params):
    """Full-module math (q/k/softmax included, out_proj and fc NOT composed)."""
    (w_cls, b_cls, w_q, b_q, w_k, b_k, w_v, b_v, w_o, b_o, w_fc, b_fc) = ref_params
    dot = lambda a, w: jnp.dot(a.astype(jnp.bfloat16), w.astype(jnp.bfloat16),
                               preferred_element_type=jnp.float32)

    emb = emb_table.astype(jnp.bfloat16)[token_ids].astype(jnp.float32)   # [B, S, DE]
    pooled = emb.mean(axis=1)                                             # [B, DE]
    logits = dot(pooled, w_cls) + b_cls                                   # [B, E]

    q = dot(logits, w_q) + b_q
    k = dot(logits, w_k) + b_k
    v = dot(logits, w_v) + b_v
    qh = q.reshape(B, H, DH) / math.sqrt(DH)
    kh = k.reshape(B, H, DH)
    vh = v.reshape(B, H, DH)
    scores = jnp.sum(qh * kh, axis=-1, keepdims=True)                     # [B, H, 1]
    attn_w = jax.nn.softmax(scores, axis=-1)                              # == 1.0 (one key)
    attn = (attn_w * vh).reshape(B, E)
    mha = dot(attn, w_o) + b_o

    return dot(mha, w_fc) + b_fc                                          # [B, 1]


def make_params():
    keys = jax.random.split(jax.random.PRNGKey(0), 16)
    init = lambda k, shape, scale: (scale * jax.random.normal(k, shape)).astype(jnp.float32)

    emb_table = init(keys[0], (VOCAB, DE), 0.02)

    w_cls = init(keys[1], (DE, E), 1.0 / math.sqrt(DE)); b_cls = init(keys[2], (1, E), 0.01)
    w_q = init(keys[3], (E, E), 1.0 / math.sqrt(E));     b_q = init(keys[4], (1, E), 0.01)
    w_k = init(keys[5], (E, E), 1.0 / math.sqrt(E));     b_k = init(keys[6], (1, E), 0.01)
    w_v = init(keys[7], (E, E), 1.0 / math.sqrt(E));     b_v = init(keys[8], (1, E), 0.01)
    w_o = init(keys[9], (E, E), 1.0 / math.sqrt(E));     b_o = init(keys[10], (1, E), 0.01)
    w_fc = init(keys[11], (E, 1), 1.0 / math.sqrt(E));   b_fc = init(keys[12], (1, 1), 0.01)

    ref_params = (w_cls, b_cls, w_q, b_q, w_k, b_k, w_v, b_v, w_o, b_o, w_fc, b_fc)

    # ---- packed kernel operands (q/k are dead; out_proj and fc composed offline) ----
    w_fc_pad = jnp.pad(w_fc, ((0, 0), (0, OUT_PAD - 1)))         # [E, 128], column 0 real
    b_fc_pad = jnp.pad(b_fc, ((0, 0), (0, OUT_PAD - 1)))         # [1, 128]
    w_ofc = w_o @ w_fc_pad                                       # [E, 128], column 0 real
    b_ofc = b_o @ w_fc_pad + b_fc_pad                            # [1, 128]

    w_slab = jnp.concatenate([w_cls, w_v, w_ofc], axis=0).astype(jnp.bfloat16)   # [320, 128]
    b_slab = jnp.pad(jnp.concatenate([b_cls, b_v, b_ofc], axis=0),
                     ((0, 8 - 3), (0, 0)))                       # [8, 128] f32
    assert w_slab.shape == (W_ROWS, OUT_PAD)

    # 1/S mean scale folded into the table; S = 16 is a power of two so this is exact in bf16.
    emb_scaled = (emb_table * (1.0 / S)).astype(jnp.bfloat16)    # [VOCAB, DE] bf16

    return emb_table, ref_params, (emb_scaled, w_slab, b_slab), keys[13]


if __name__ == "__main__":
    emb_table, ref_params, (emb_scaled, w_slab, b_slab), data_key = make_params()

    # Deterministic example input: token ids [B, S] (what the PyTorch module's forward receives).
    token_ids = jax.random.randint(data_key, (B, S), 0, VOCAB, dtype=jnp.int32)

    out = jax.block_until_ready(sts_forward_pallas(token_ids, emb_scaled, w_slab, b_slab))
    ref = sts_forward_reference(token_ids, emb_table, ref_params)

    assert out.shape == (B, 1), out.shape
    # Tolerance absorbs bf16-level rounding differences from the offline W_o @ W_fc composition.
    assert jnp.allclose(out, ref, rtol=2e-2, atol=2e-3), (out, ref)

    print("KERNEL_OK")
</pallas_src>

<mosaic_0001>
module attributes {stable_mosaic.version = 11 : i64} {
  func.func @sts_kernel(%arg0: i32, %arg1: memref<16x16xi32, #tpu.memory_space<vmem>>, %arg2: memref<256x64xbf16, #tpu.memory_space<vmem>>, %arg3: memref<320x128xbf16, #tpu.memory_space<vmem>>, %arg4: memref<8x128xf32, #tpu.memory_space<vmem>>, %arg5: memref<16x128xf32, #tpu.memory_space<vmem>>) attributes {dimension_semantics = [#tpu.dimension_semantics<parallel>], iteration_bounds = array<i64: 4>, scalar_prefetch = 0 : i64, scratch_operands = 0 : i64, tpu.core_type = #tpu.core_type<tc>, window_params = [{transform_indices = @transform_0, window_bounds = array<i64: 16, 16>}, {pipeline_mode = #tpu.pipeline_mode<synchronous>, transform_indices = @transform_1, window_bounds = array<i64: 256, 64>}, {pipeline_mode = #tpu.pipeline_mode<synchronous>, transform_indices = @transform_2, window_bounds = array<i64: 320, 128>}, {pipeline_mode = #tpu.pipeline_mode<synchronous>, transform_indices = @transform_3, window_bounds = array<i64: 8, 128>}, {transform_indices = @transform_4, window_bounds = array<i64: 16, 128>}]} {
    %c0 = arith.constant 0 : index
    %c0_0 = arith.constant 0 : index
    %0 = vector.load %arg1[%c0, %c0_0] : memref<16x16xi32, #tpu.memory_space<vmem>>, vector<16x16xi32>
    %1 = tpu.iota {dimensions = array<i32: 1>} : vector<16x256xi32>
    %cst = arith.constant 0.000000e+00 : f32
    %2 = vector.broadcast %cst : f32 to vector<16x256xf32>
    %3 = vector.extract_strided_slice %0 {offsets = [0, 0], sizes = [16, 1], strides = [1, 1]} : vector<16x16xi32> to vector<16x1xi32>
    %4 = vector.broadcast %3 : vector<16x1xi32> to vector<16x256xi32>
    %5 = arith.cmpi eq, %4, %1 : vector<16x256xi32>
    %6 = arith.extui %5 : vector<16x256xi1> to vector<16x256xi32>
    %7 = arith.sitofp %6 : vector<16x256xi32> to vector<16x256xf32>
    %8 = arith.addf %2, %7 : vector<16x256xf32>
    %9 = vector.extract_strided_slice %0 {offsets = [0, 1], sizes = [16, 1], strides = [1, 1]} : vector<16x16xi32> to vector<16x1xi32>
    %10 = vector.broadcast %9 : vector<16x1xi32> to vector<16x256xi32>
    %11 = arith.cmpi eq, %10, %1 : vector<16x256xi32>
    %12 = arith.extui %11 : vector<16x256xi1> to vector<16x256xi32>
    %13 = arith.sitofp %12 : vector<16x256xi32> to vector<16x256xf32>
    %14 = arith.addf %8, %13 : vector<16x256xf32>
    %15 = vector.extract_strided_slice %0 {offsets = [0, 2], sizes = [16, 1], strides = [1, 1]} : vector<16x16xi32> to vector<16x1xi32>
    %16 = vector.broadcast %15 : vector<16x1xi32> to vector<16x256xi32>
    %17 = arith.cmpi eq, %16, %1 : vector<16x256xi32>
    %18 = arith.extui %17 : vector<16x256xi1> to vector<16x256xi32>
    %19 = arith.sitofp %18 : vector<16x256xi32> to vector<16x256xf32>
    %20 = arith.addf %14, %19 : vector<16x256xf32>
    %21 = vector.extract_strided_slice %0 {offsets = [0, 3], sizes = [16, 1], strides = [1, 1]} : vector<16x16xi32> to vector<16x1xi32>
    %22 = vector.broadcast %21 : vector<16x1xi32> to vector<16x256xi32>
    %23 = arith.cmpi eq, %22, %1 : vector<16x256xi32>
    %24 = arith.extui %23 : vector<16x256xi1> to vector<16x256xi32>
    %25 = arith.sitofp %24 : vector<16x256xi32> to vector<16x256xf32>
    %26 = arith.addf %20, %25 : vector<16x256xf32>
    %27 = vector.extract_strided_slice %0 {offsets = [0, 4], sizes = [16, 1], strides = [1, 1]} : vector<16x16xi32> to vector<16x1xi32>
    %28 = vector.broadcast %27 : vector<16x1xi32> to vector<16x256xi32>
    %29 = arith.cmpi eq, %28, %1 : vector<16x256xi32>
    %30 = arith.extui %29 : vector<16x256xi1> to vector<16x256xi32>
    %31 = arith.sitofp %30 : vector<16x256xi32> to vector<16x256xf32>
    %32 = arith.addf %26, %31 : vector<16x256xf32>
    %33 = vector.extract_strided_slice %0 {offsets = [0, 5], sizes = [16, 1], strides = [1, 1]} : vector<16x16xi32> to vector<16x1xi32>
    %34 = vector.broadcast %33 : vector<16x1xi32> to vector<16x256xi32>
    %35 = arith.cmpi eq, %34, %1 : vector<16x256xi32>
    %36 = arith.extui %35 : vector<16x256xi1> to vector<16x256xi32>
    %37 = arith.sitofp %36 : vector<16x256xi32> to vector<16x256xf32>
    %38 = arith.addf %32, %37 : vector<16x256xf32>
    %39 = vector.extract_strided_slice %0 {offsets = [0, 6], sizes = [16, 1], strides = [1, 1]} : vector<16x16xi32> to vector<16x1xi32>
    %40 = vector.broadcast %39 : vector<16x1xi32> to vector<16x256xi32>
    %41 = arith.cmpi eq, %40, %1 : vector<16x256xi32>
    %42 = arith.extui %41 : vector<16x256xi1> to vector<16x256xi32>
    %43 = arith.sitofp %42 : vector<16x256xi32> to vector<16x256xf32>
    %44 = arith.addf %38, %43 : vector<16x256xf32>
    %45 = vector.extract_strided_slice %0 {offsets = [0, 7], sizes = [16, 1], strides = [1, 1]} : vector<16x16xi32> to vector<16x1xi32>
    %46 = vector.broadcast %45 : vector<16x1xi32> to vector<16x256xi32>
    %47 = arith.cmpi eq, %46, %1 : vector<16x256xi32>
    %48 = arith.extui %47 : vector<16x256xi1> to vector<16x256xi32>
    %49 = arith.sitofp %48 : vector<16x256xi32> to vector<16x256xf32>
    %50 = arith.addf %44, %49 : vector<16x256xf32>
    %51 = vector.extract_strided_slice %0 {offsets = [0, 8], sizes = [16, 1], strides = [1, 1]} : vector<16x16xi32> to vector<16x1xi32>
    %52 = vector.broadcast %51 : vector<16x1xi32> to vector<16x256xi32>
    %53 = arith.cmpi eq, %52, %1 : vector<16x256xi32>
    %54 = arith.extui %53 : vector<16x256xi1> to vector<16x256xi32>
    %55 = arith.sitofp %54 : vector<16x256xi32> to vector<16x256xf32>
    %56 = arith.addf %50, %55 : vector<16x256xf32>
    %57 = vector.extract_strided_slice %0 {offsets = [0, 9], sizes = [16, 1], strides = [1, 1]} : vector<16x16xi32> to vector<16x1xi32>
    %58 = vector.broadcast %57 : vector<16x1xi32> to vector<16x256xi32>
    %59 = arith.cmpi eq, %58, %1 : vector<16x256xi32>
    %60 = arith.extui %59 : vector<16x256xi1> to vector<16x256xi32>
    %61 = arith.sitofp %60 : vector<16x256xi32> to vector<16x256xf32>
    %62 = arith.addf %56, %61 : vector<16x256xf32>
    %63 = vector.extract_strided_slice %0 {offsets = [0, 10], sizes = [16, 1], strides = [1, 1]} : vector<16x16xi32> to vector<16x1xi32>
    %64 = vector.broadcast %63 : vector<16x1xi32> to vector<16x256xi32>
    %65 = arith.cmpi eq, %64, %1 : vector<16x256xi32>
    %66 = arith.extui %65 : vector<16x256xi1> to vector<16x256xi32>
    %67 = arith.sitofp %66 : vector<16x256xi32> to vector<16x256xf32>
    %68 = arith.addf %62, %67 : vector<16x256xf32>
    %69 = vector.extract_strided_slice %0 {offsets = [0, 11], sizes = [16, 1], strides = [1, 1]} : vector<16x16xi32> to vector<16x1xi32>
    %70 = vector.broadcast %69 : vector<16x1xi32> to vector<16x256xi32>
    %71 = arith.cmpi eq, %70, %1 : vector<16x256xi32>
    %72 = arith.extui %71 : vector<16x256xi1> to vector<16x256xi32>
    %73 = arith.sitofp %72 : vector<16x256xi32> to vector<16x256xf32>
    %74 = arith.addf %68, %73 : vector<16x256xf32>
    %75 = vector.extract_strided_slice %0 {offsets = [0, 12], sizes = [16, 1], strides = [1, 1]} : vector<16x16xi32> to vector<16x1xi32>
    %76 = vector.broadcast %75 : vector<16x1xi32> to vector<16x256xi32>
    %77 = arith.cmpi eq, %76, %1 : vector<16x256xi32>
    %78 = arith.extui %77 : vector<16x256xi1> to vector<16x256xi32>
    %79 = arith.sitofp %78 : vector<16x256xi32> to vector<16x256xf32>
    %80 = arith.addf %74, %79 : vector<16x256xf32>
    %81 = vector.extract_strided_slice %0 {offsets = [0, 13], sizes = [16, 1], strides = [1, 1]} : vector<16x16xi32> to vector<16x1xi32>
    %82 = vector.broadcast %81 : vector<16x1xi32> to vector<16x256xi32>
    %83 = arith.cmpi eq, %82, %1 : vector<16x256xi32>
    %84 = arith.extui %83 : vector<16x256xi1> to vector<16x256xi32>
    %85 = arith.sitofp %84 : vector<16x256xi32> to vector<16x256xf32>
    %86 = arith.addf %80, %85 : vector<16x256xf32>
    %87 = vector.extract_strided_slice %0 {offsets = [0, 14], sizes = [16, 1], strides = [1, 1]} : vector<16x16xi32> to vector<16x1xi32>
    %88 = vector.broadcast %87 : vector<16x1xi32> to vector<16x256xi32>
    %89 = arith.cmpi eq, %88, %1 : vector<16x256xi32>
    %90 = arith.extui %89 : vector<16x256xi1> to vector<16x256xi32>
    %91 = arith.sitofp %90 : vector<16x256xi32> to vector<16x256xf32>
    %92 = arith.addf %86, %91 : vector<16x256xf32>
    %93 = vector.extract_strided_slice %0 {offsets = [0, 15], sizes = [16, 1], strides = [1, 1]} : vector<16x16xi32> to vector<16x1xi32>
    %94 = vector.broadcast %93 : vector<16x1xi32> to vector<16x256xi32>
    %95 = arith.cmpi eq, %94, %1 : vector<16x256xi32>
    %96 = arith.extui %95 : vector<16x256xi1> to vector<16x256xi32>
    %97 = arith.sitofp %96 : vector<16x256xi32> to vector<16x256xf32>
    %98 = arith.addf %92, %97 : vector<16x256xf32>
    %99 = arith.truncf %98 : vector<16x256xf32> to vector<16x256xbf16>
    %c0_1 = arith.constant 0 : index
    %c0_2 = arith.constant 0 : index
    %100 = vector.load %arg2[%c0_1, %c0_2] : memref<256x64xbf16, #tpu.memory_space<vmem>>, vector<256x64xbf16>
    %cst_3 = arith.constant dense<0.000000e+00> : vector<16x64xf32>
    %101 = tpu.matmul %99, %100, %cst_3 {dimension_numbers = #tpu.dot_dimension_numbers<[1], [0], [0], [1], [0, 0, 1, 1], [], []>} : vector<16x256xbf16>, vector<256x64xbf16>, vector<16x64xf32> -> vector<16x64xf32>
    %c0_4 = arith.constant 0 : index
    %c0_5 = arith.constant 0 : index
    %102 = vector.load %arg4[%c0_4, %c0_5] : memref<8x128xf32, #tpu.memory_space<vmem>>, vector<8x128xf32>
    %103 = vector.extract_strided_slice %102 {offsets = [0, 0], sizes = [1, 128], strides = [1, 1]} : vector<8x128xf32> to vector<1x128xf32>
    %104 = vector.extract_strided_slice %102 {offsets = [1, 0], sizes = [1, 128], strides = [1, 1]} : vector<8x128xf32> to vector<1x128xf32>
    %105 = vector.extract_strided_slice %102 {offsets = [2, 0], sizes = [1, 128], strides = [1, 1]} : vector<8x128xf32> to vector<1x128xf32>
    %106 = arith.truncf %101 : vector<16x64xf32> to vector<16x64xbf16>
    %c0_6 = arith.constant 0 : index
    %c0_7 = arith.constant 0 : index
    %107 = vector.load %arg3[%c0_6, %c0_7] : memref<320x128xbf16, #tpu.memory_space<vmem>>, vector<64x128xbf16>
    %cst_8 = arith.constant dense<0.000000e+00> : vector<16x128xf32>
    %108 = tpu.matmul %106, %107, %cst_8 {dimension_numbers = #tpu.dot_dimension_numbers<[1], [0], [0], [1], [0, 0, 1, 1], [], []>} : vector<16x64xbf16>, vector<64x128xbf16>, vector<16x128xf32> -> vector<16x128xf32>
    %109 = vector.broadcast %103 : vector<1x128xf32> to vector<16x128xf32>
    %110 = arith.addf %108, %109 : vector<16x128xf32>
    %111 = arith.truncf %110 : vector<16x128xf32> to vector<16x128xbf16>
    %c64 = arith.constant 64 : index
    %c0_9 = arith.constant 0 : index
    %112 = vector.load %arg3[%c64, %c0_9] : memref<320x128xbf16, #tpu.memory_space<vmem>>, vector<128x128xbf16>
    %cst_10 = arith.constant dense<0.000000e+00> : vector<16x128xf32>
    %113 = tpu.matmul %111, %112, %cst_10 {dimension_numbers = #tpu.dot_dimension_numbers<[1], [0], [0], [1], [0, 0, 1, 1], [], []>} : vector<16x128xbf16>, vector<128x128xbf16>, vector<16x128xf32> -> vector<16x128xf32>
    %114 = vector.broadcast %104 : vector<1x128xf32> to vector<16x128xf32>
    %115 = arith.addf %113, %114 : vector<16x128xf32>
    %116 = arith.truncf %115 : vector<16x128xf32> to vector<16x128xbf16>
    %c192 = arith.constant 192 : index
    %c0_11 = arith.constant 0 : index
    %117 = vector.load %arg3[%c192, %c0_11] : memref<320x128xbf16, #tpu.memory_space<vmem>>, vector<128x128xbf16>
    %cst_12 = arith.constant dense<0.000000e+00> : vector<16x128xf32>
    %118 = tpu.matmul %116, %117, %cst_12 {dimension_numbers = #tpu.dot_dimension_numbers<[1], [0], [0], [1], [0, 0, 1, 1], [], []>} : vector<16x128xbf16>, vector<128x128xbf16>, vector<16x128xf32> -> vector<16x128xf32>
    %119 = vector.broadcast %105 : vector<1x128xf32> to vector<16x128xf32>
    %120 = arith.addf %118, %119 : vector<16x128xf32>
    %c0_13 = arith.constant 0 : index
    %c0_14 = arith.constant 0 : index
    %121 = vector.load %arg5[%c0_13, %c0_14] : memref<16x128xf32, #tpu.memory_space<vmem>>, vector<16x128xf32>
    tpu.vector_store %arg5[%c0_13, %c0_14], %120 {strides = array<i32>} : memref<16x128xf32, #tpu.memory_space<vmem>>, vector<16x128xf32>,
    return
  }
  func.func @transform_0(%arg0: i32) -> (i32, i32) {
    %c0_i32 = arith.constant 0 : i32
    %c0_i32_0 = arith.constant 0 : i32
    return %arg0, %c0_i32 : i32, i32
  }
  func.func @transform_1(%arg0: i32) -> (i32, i32) {
    %c0_i32 = arith.constant 0 : i32
    %c0_i32_0 = arith.constant 0 : i32
    %c0_i32_1 = arith.constant 0 : i32
    return %c0_i32, %c0_i32_0 : i32, i32
  }
  func.func @transform_2(%arg0: i32) -> (i32, i32) {
    %c0_i32 = arith.constant 0 : i32
    %c0_i32_0 = arith.constant 0 : i32
    %c0_i32_1 = arith.constant 0 : i32
    return %c0_i32, %c0_i32_0 : i32, i32
  }
  func.func @transform_3(%arg0: i32) -> (i32, i32) {
    %c0_i32 = arith.constant 0 : i32
    %c0_i32_0 = arith.constant 0 : i32
    %c0_i32_1 = arith.constant 0 : i32
    return %c0_i32, %c0_i32_0 : i32, i32
  }
  func.func @transform_4(%arg0: i32) -> (i32, i32) {
    %c0_i32 = arith.constant 0 : i32
    %c0_i32_0 = arith.constant 0 : i32
    return %arg0, %c0_i32 : i32, i32
  }
}

</mosaic_0001>

<llo_original>
// kernel: tpu_custom_call.1
$region0: #{tpu_custom_call.1}
  #allocation0 [shape = 'u32[]', space=smem, size = 0x4, offset = 0x4, fixed_abs, tag = 'smem constant byte address 0x4 - core index']
  #allocation1 [shape = 'u32[72,128]{1,0:T(1,128)}', space=vmem, size = 0x9000, scoped, tag = 'internal scratch']
  %s0 = inlined_call_operand.vmem [shape: s32[64,16], index: 0, kind: input, shape index: {}]
  %s1 = inlined_call_operand.vmem [shape: bf16[256,64], index: 1, kind: input, shape index: {}]
  %s2 = inlined_call_operand.vmem [shape: bf16[320,128], index: 2, kind: input, shape index: {}]
  %s3 = inlined_call_operand.vmem [shape: f32[8,128], index: 3, kind: input, shape index: {}]
  %s4 = inlined_call_operand.hbm [shape: f32[64,128], index: 4, kind: output, shape index: {}]
  %s5 = sld [smem:[#allocation0]]
  $region49: #{tpu_custom_call.1} parent=0
    _
  %s7 = ssub.s32 1, %s5
  %s8 = scalar_select 0, %s7, %s5
  $region1: #{tpu_custom_call.1} parent=0
    #allocation2 [shape = 'u8[16384]{0}', space=vmem, size = 0x4000, scoped, tag = 'output window, operand 0']
    #allocation3 [shape = 's32[2]{0}', space=sflag, size = 0x8, scoped, tag = 'scoped memory for tpu_custom_call.1']
    %9 = vsyncpa [#allocation3], 0
    %s10 = scalar_lea.sflag [#allocation3], 1
    %11 = vsyncpa %s10, 0
    loop: start=0, step=1, limit=6
    $region2: #{tpu_custom_call.1} parent=1 // loop_pre_header
      _
    $region3: #{tpu_custom_call.1} parent=1 // loop_header
      %s13 = sphi 0, %s17
      %p14 = scmp.ge.s32.totalorder %s13, 6
      %s23 = sphi 0, %s25
      %s26 = sphi 0, %s23
      %s27 = sphi 0, %s26
      %s43 = sphi 0, %s27
      %s47 = sphi 0, %s47
      %s49 = sphi 0, %s47
      %s50 = sphi 0, %s49
      %s64 = sphi 0, %s50
      %s68 = sphi 0, %s68
      %s70 = sphi 0, %s68
      %s71 = sphi 0, %s70
      %s85 = sphi 0, %s71
      %s89 = sphi 0, %s89
      %s91 = sphi 0, %s89
      %s92 = sphi 0, %s91
      %s106 = sphi 0, %s92
      %s112 = sphi 0, %s114
      %s115 = sphi 0, %s112
      %s116 = sphi 0, %s115
      %s132 = sphi 0, %s116
    $region4: #{tpu_custom_call.1} parent=1 // loop_header_branch
      %16 = sbr.rel (%p14) target = $region8
    $region5: #{tpu_custom_call.1} parent=1 // loop_body
      %s18 = ssub.s32 %s13, 1
      %s19 = ssub.s32 %s13, 2
      %s20 = sadd.s32 %s13, 1
      %s21 = ssub.s32 %s13, %s20
      %p22 = scmp.eq.s32.totalorder %s21, 0
      %s24 = sadd.s32 %s23, 1
      %s25 = scalar_select %p22, %s23, %s24
      %p28 = pneg %p22
      %p29 = scmp.eq.s32.totalorder %s13, 3
      %p30 = por %p28, %p29
      %p31 = scmp.ne.s32.totalorder %s23, %s26
      %p32 = scmp.eq.s32.totalorder %s13, 0
      %p33 = por %p31, %p32
      %p34 = scmp.ne.s32.totalorder %s23, %s26
      %p35 = scmp.eq.s32.totalorder %s18, 3
      %p36 = por %p34, %p35
      %p37 = scmp.ne.s32.totalorder %s26, %s27
      %p38 = scmp.eq.s32.totalorder %s18, 0
      %p39 = por %p37, %p38
      %p40 = scmp.ne.s32.totalorder %s26, %s27
      %p41 = scmp.eq.s32.totalorder %s19, 3
      %p42 = por %p40, %p41
      %p44 = scmp.ne.s32.totalorder %s27, %s43
      %p45 = scmp.eq.s32.totalorder %s19, 0
      %p46 = por %p44, %p45
      %s48 = sadd.s32 %s47, 1
      %p51 = scmp.eq.s32.totalorder %s13, 3
      %p52 = scmp.ne.s32.totalorder %s47, %s49
      %p53 = scmp.eq.s32.totalorder %s13, 0
      %p54 = por %p52, %p53
      %p55 = scmp.ne.s32.totalorder %s47, %s49
      %p56 = scmp.eq.s32.totalorder %s18, 3
      %p57 = por %p55, %p56
      %p58 = scmp.ne.s32.totalorder %s49, %s50
      %p59 = scmp.eq.s32.totalorder %s18, 0
      %p60 = por %p58, %p59
      %p61 = scmp.ne.s32.totalorder %s49, %s50
      %p62 = scmp.eq.s32.totalorder %s19, 3
      %p63 = por %p61, %p62
      %p65 = scmp.ne.s32.totalorder %s50, %s64
      %p66 = scmp.eq.s32.totalorder %s19, 0
      %p67 = por %p65, %p66
      %s69 = sadd.s32 %s68, 1
      %p72 = scmp.eq.s32.totalorder %s13, 3
      %p73 = scmp.ne.s32.totalorder %s68, %s70
      %p74 = scmp.eq.s32.totalorder %s13, 0
      %p75 = por %p73, %p74
      %p76 = scmp.ne.s32.totalorder %s68, %s70
      %p77 = scmp.eq.s32.totalorder %s18, 3
      %p78 = por %p76, %p77
      %p79 = scmp.ne.s32.totalorder %s70, %s71
      %p80 = scmp.eq.s32.totalorder %s18, 0
      %p81 = por %p79, %p80
      %p82 = scmp.ne.s32.totalorder %s70, %s71
      %p83 = scmp.eq.s32.totalorder %s19, 3
      %p84 = por %p82, %p83
      %p86 = scmp.ne.s32.totalorder %s71, %s85
      %p87 = scmp.eq.s32.totalorder %s19, 0
      %p88 = por %p86, %p87
      %s90 = sadd.s32 %s89, 1
      %p93 = scmp.eq.s32.totalorder %s13, 3
      %p94 = scmp.ne.s32.totalorder %s89, %s91
      %p95 = scmp.eq.s32.totalorder %s13, 0
      %p96 = por %p94, %p95
      %p97 = scmp.ne.s32.totalorder %s89, %s91
      %p98 = scmp.eq.s32.totalorder %s18, 3
      %p99 = por %p97, %p98
      %p100 = scmp.ne.s32.totalorder %s91, %s92
      %p101 = scmp.eq.s32.totalorder %s18, 0
      %p102 = por %p100, %p101
      %p103 = scmp.ne.s32.totalorder %s91, %s92
      %p104 = scmp.eq.s32.totalorder %s19, 3
      %p105 = por %p103, %p104
      %p107 = scmp.ne.s32.totalorder %s92, %s106
      %p108 = scmp.eq.s32.totalorder %s19, 0
      %p109 = por %p107, %p108
      %s110 = ssub.s32 %s13, %s20
      %p111 = scmp.eq.s32.totalorder %s110, 0
      %s113 = sadd.s32 %s112, 1
      %s114 = scalar_select %p111, %s112, %s113
      %p117 = pneg %p111
      %p118 = scmp.eq.s32.totalorder %s13, 3
      %p119 = por %p117, %p118
      %p120 = scmp.ne.s32.totalorder %s112, %s115
      %p121 = scmp.eq.s32.totalorder %s13, 0
      %p122 = por %p120, %p121
      %p123 = scmp.ne.s32.totalorder %s112, %s115
      %p124 = scmp.eq.s32.totalorder %s18, 3
      %p125 = por %p123, %p124
      %p126 = scmp.ne.s32.totalorder %s115, %s116
      %p127 = scmp.eq.s32.totalorder %s18, 0
      %p128 = por %p126, %p127
      %p129 = scmp.ne.s32.totalorder %s115, %s116
      %p130 = scmp.eq.s32.totalorder %s19, 3
      %p131 = por %p129, %p130
      %p133 = scmp.ne.s32.totalorder %s116, %s132
      %p134 = scmp.eq.s32.totalorder %s19, 0
      %p135 = por %p133, %p134
      %p136 = scmp.le.s32.totalorder 1, %s13
      %p137 = scmp.lt.s32.totalorder %s13, 5
      %p138 = pnand %p136, %p137
      %p139 = pneg %p138
      // Predicated region
      $region9: #{tpu_custom_call.1} parent=5 // pred_check
        _
      $region10: #{tpu_custom_call.1} parent=5 // pred_check_branch
        %141 = sbr.rel (%p138) target = $region12
      $region11: #{tpu_custom_call.1} parent=5 // pred_region
        %s142 = ssub.s32 %s13, 1
        // Predicated region
        $region13: #{tpu_custom_call.1} parent=11 // pred_check
          %p143 = pneg %p60
        $region14: #{tpu_custom_call.1} parent=11 // pred_check_branch
          %145 = sbr.rel (%p143) target = $region16
        $region15: #{tpu_custom_call.1} parent=11 // pred_region
          _
        $region16: #{tpu_custom_call.1} parent=11 // pred_fallthru
          _
        // Predicated region
        $region17: #{tpu_custom_call.1} parent=11 // pred_check
          %p146 = pneg %p81
        $region18: #{tpu_custom_call.1} parent=11 // pred_check_branch
          %148 = sbr.rel (%p146) target = $region20
        $region19: #{tpu_custom_call.1} parent=11 // pred_region
          _
        $region20: #{tpu_custom_call.1} parent=11 // pred_fallthru
          _
        // Predicated region
        $region21: #{tpu_custom_call.1} parent=11 // pred_check
          %p149 = pneg %p102
        $region22: #{tpu_custom_call.1} parent=11 // pred_check_branch
          %151 = sbr.rel (%p149) target = $region24
        $region23: #{tpu_custom_call.1} parent=11 // pred_region
          _
        $region24: #{tpu_custom_call.1} parent=11 // pred_fallthru
          _
      $region12: #{tpu_custom_call.1} parent=5 // pred_fallthru
        _
      %p152 = scmp.lt.s32.totalorder %s13, 4
      // Predicated region
      $region25: #{tpu_custom_call.1} parent=5 // pred_check
        %p153 = pneg %p152
      $region26: #{tpu_custom_call.1} parent=5 // pred_check_branch
        %155 = sbr.rel (%p153) target = $region28
      $region27: #{tpu_custom_call.1} parent=5 // pred_region
        // Predicated region
        $region29: #{tpu_custom_call.1} parent=27 // pred_check
          %p156 = pneg %p33
        $region30: #{tpu_custom_call.1} parent=27 // pred_check_branch
          %158 = sbr.rel (%p156) target = $region32
        $region31: #{tpu_custom_call.1} parent=27 // pred_region
          %s159 = smul.u32 2, %s13
          %p160 = scmp.lt.s32.totalorder %s159, 7
          %s161 = scalar_select %p160, %s159, 7
          %s162 = smul.addr %s161, 8
          %s163 = scalar_lea.vmem %s0, %s162
          %s164 = smul.u32 2, %s13
        $region32: #{tpu_custom_call.1} parent=27 // pred_fallthru
          _
      $region28: #{tpu_custom_call.1} parent=5 // pred_fallthru
        _
      %p165 = scmp.le.s32.totalorder 1, %s13
      %p166 = scmp.lt.s32.totalorder %s13, 5
      %p167 = pnand %p165, %p166
      %p168 = pneg %p167
      // Predicated region
      $region33: #{tpu_custom_call.1} parent=5 // pred_check
        _
      $region34: #{tpu_custom_call.1} parent=5 // pred_check_branch
        %170 = sbr.rel (%p167) target = $region36
      $region35: #{tpu_custom_call.1} parent=5 // pred_region
        %s171 = ssub.s32 %s13, 1
        %s172 = smul.u32 2, %s18
        %p173 = scmp.lt.s32.totalorder %s172, 7
        %s174 = scalar_select %p173, %s172, 7
        %s175 = smul.addr %s174, 8
        %s176 = scalar_lea.vmem %s0, %s175
        %p177 = pneg %p39
        %p178 = pneg %p36
        %p179 = pneg %p60
        %p180 = pneg %p57
        %p181 = pneg %p81
        %p182 = pneg %p78
        %p183 = pneg %p102
        %p184 = pneg %p99
        %p185 = pneg %p128
        %p186 = pneg %p125
        %s187 = sand.u32 %s115, 1
        %s188 = scalar_lea.sflag [#allocation3], %s187
        %s189 = sand.u32 %s115, 1
        %s190 = smul.addr %s189, 16
        %s191 = scalar_lea.vmem [#allocation2], %s190
        %s192 = smul.u32 2, %s18
        %p193 = scmp.lt.s32.totalorder %s192, 7
        %s194 = scalar_select %p193, %s192, 7
        %s195 = smul.addr %s194, 8
        %s196 = scalar_lea.vmem %s0, %s195
        %s197 = smul.u32 2, %s18
        %s198 = smul.u32 2, %s18
        %v200 = vld [vmem:[%s196] sm:$0xff]
        %v201 = vld [vmem:[%s196 + $0x8] sm:$0xff]
        %v202 = vlaneseq
        %v203 = vand.u32 %v202, 127
        %v204 = vadd.s32 %v203, 128
        %205 = vset.pattern.permute.xlu0 0
        %206 = vperm.xlu0 %205, %v200
        %v207 = vpop.permute.xlu0 %206
        %208 = vset.pattern.permute.xlu0 0
        %209 = vperm.xlu0 %208, %v201
        %v210 = vpop.permute.xlu0 %209
        %vm211 = vcmp.eq.s32.totalorder %v207, %v203
        %vm212 = vcmp.eq.s32.totalorder %v207, %v204
        %vm213 = vcmp.eq.s32.totalorder %v210, %v203
        %vm214 = vcmp.eq.s32.totalorder %v210, %v204
        %v215 = vsel %vm211, 1, 0
        %v216 = vsel %vm212, 1, 0
        %v217 = vsel %vm213, 1, 0
        %v218 = vsel %vm214, 1, 0
        %v219 = vcvt.s32.f32 %v215
        %v220 = vcvt.s32.f32 %v216
        %v221 = vcvt.s32.f32 %v217
        %v222 = vcvt.s32.f32 %v218
        %v223 = vadd.f32 %v219, 0.0
        %v224 = vadd.f32 %v220, 0.0
        %v225 = vadd.f32 %v221, 0.0
        %v226 = vadd.f32 %v222, 0.0
        %227 = vset.pattern.permute.xlu0 1
        %228 = vperm.xlu0 %227, %v200
        %v229 = vpop.permute.xlu0 %228
        %230 = vset.pattern.permute.xlu0 1
        %231 = vperm.xlu0 %230, %v201
        %v232 = vpop.permute.xlu0 %231
        %vm233 = vcmp.eq.s32.totalorder %v229, %v203
        %vm234 = vcmp.eq.s32.totalorder %v229, %v204
        %vm235 = vcmp.eq.s32.totalorder %v232, %v203
        %vm236 = vcmp.eq.s32.totalorder %v232, %v204
        %v237 = vsel %vm233, 1, 0
        %v238 = vsel %vm234, 1, 0
        %v239 = vsel %vm235, 1, 0
        %v240 = vsel %vm236, 1, 0
        %v241 = vcvt.s32.f32 %v237
        %v242 = vcvt.s32.f32 %v238
        %v243 = vcvt.s32.f32 %v239
        %v244 = vcvt.s32.f32 %v240
        %v245 = vadd.f32 %v223, %v241
        %v246 = vadd.f32 %v224, %v242
        %v247 = vadd.f32 %v225, %v243
        %v248 = vadd.f32 %v226, %v244
        %249 = vset.pattern.permute.xlu0 2
        %250 = vperm.xlu0 %249, %v200
        %v251 = vpop.permute.xlu0 %250
        %252 = vset.pattern.permute.xlu0 2
        %253 = vperm.xlu0 %252, %v201
        %v254 = vpop.permute.xlu0 %253
        %vm255 = vcmp.eq.s32.totalorder %v251, %v203
        %vm256 = vcmp.eq.s32.totalorder %v251, %v204
        %vm257 = vcmp.eq.s32.totalorder %v254, %v203
        %vm258 = vcmp.eq.s32.totalorder %v254, %v204
        %v259 = vsel %vm255, 1, 0
        %v260 = vsel %vm256, 1, 0
        %v261 = vsel %vm257, 1, 0
        %v262 = vsel %vm258, 1, 0
        %v263 = vcvt.s32.f32 %v259
        %v264 = vcvt.s32.f32 %v260
        %v265 = vcvt.s32.f32 %v261
        %v266 = vcvt.s32.f32 %v262
        %v267 = vadd.f32 %v245, %v263
        %v268 = vadd.f32 %v246, %v264
        %v269 = vadd.f32 %v247, %v265
        %v270 = vadd.f32 %v248, %v266
        %271 = vset.pattern.permute.xlu0 3
        %272 = vperm.xlu0 %271, %v200
        %v273 = vpop.permute.xlu0 %272
        %274 = vset.pattern.permute.xlu0 3
        %275 = vperm.xlu0 %274, %v201
        %v276 = vpop.permute.xlu0 %275
        %vm277 = vcmp.eq.s32.totalorder %v273, %v203
        %vm278 = vcmp.eq.s32.totalorder %v273, %v204
        %vm279 = vcmp.eq.s32.totalorder %v276, %v203
        %vm280 = vcmp.eq.s32.totalorder %v276, %v204
        %v281 = vsel %vm277, 1, 0
        %v282 = vsel %vm278, 1, 0
        %v283 = vsel %vm279, 1, 0
        %v284 = vsel %vm280, 1, 0
        %v285 = vcvt.s32.f32 %v281
        %v286 = vcvt.s32.f32 %v282
        %v287 = vcvt.s32.f32 %v283
        %v288 = vcvt.s32.f32 %v284
        %v289 = vadd.f32 %v267, %v285
        %v290 = vadd.f32 %v268, %v286
        %v291 = vadd.f32 %v269, %v287
        %v292 = vadd.f32 %v270, %v288
        %293 = vset.pattern.permute.xlu0 4
        %294 = vperm.xlu0 %293, %v200
        %v295 = vpop.permute.xlu0 %294
        %296 = vset.pattern.permute.xlu0 4
        %297 = vperm.xlu0 %296, %v201
        %v298 = vpop.permute.xlu0 %297
        %vm299 = vcmp.eq.s32.totalorder %v295, %v203
        %vm300 = vcmp.eq.s32.totalorder %v295, %v204
        %vm301 = vcmp.eq.s32.totalorder %v298, %v203
        %vm302 = vcmp.eq.s32.totalorder %v298, %v204
        %v303 = vsel %vm299, 1, 0
        %v304 = vsel %vm300, 1, 0
        %v305 = vsel %vm301, 1, 0
        %v306 = vsel %vm302, 1, 0
        %v307 = vcvt.s32.f32 %v303
        %v308 = vcvt.s32.f32 %v304
        %v309 = vcvt.s32.f32 %v305
        %v310 = vcvt.s32.f32 %v306
        %v311 = vadd.f32 %v289, %v307
        %v312 = vadd.f32 %v290, %v308
        %v313 = vadd.f32 %v291, %v309
        %v314 = vadd.f32 %v292, %v310
        %315 = vset.pattern.permute.xlu0 5
        %316 = vperm.xlu0 %315, %v200
        %v317 = vpop.permute.xlu0 %316
        %318 = vset.pattern.permute.xlu0 5
        %319 = vperm.xlu0 %318, %v201
        %v320 = vpop.permute.xlu0 %319
        %vm321 = vcmp.eq.s32.totalorder %v317, %v203
        %vm322 = vcmp.eq.s32.totalorder %v317, %v204
        %vm323 = vcmp.eq.s32.totalorder %v320, %v203
        %vm324 = vcmp.eq.s32.totalorder %v320, %v204
        %v325 = vsel %vm321, 1, 0
        %v326 = vsel %vm322, 1, 0
        %v327 = vsel %vm323, 1, 0
        %v328 = vsel %vm324, 1, 0
        %v329 = vcvt.s32.f32 %v325
        %v330 = vcvt.s32.f32 %v326
        %v331 = vcvt.s32.f32 %v327
        %v332 = vcvt.s32.f32 %v328
        %v333 = vadd.f32 %v311, %v329
        %v334 = vadd.f32 %v312, %v330
        %v335 = vadd.f32 %v313, %v331
        %v336 = vadd.f32 %v314, %v332
        %337 = vset.pattern.permute.xlu0 6
        %338 = vperm.xlu0 %337, %v200
        %v339 = vpop.permute.xlu0 %338
        %340 = vset.pattern.permute.xlu0 6
        %341 = vperm.xlu0 %340, %v201
        %v342 = vpop.permute.xlu0 %341
        %vm343 = vcmp.eq.s32.totalorder %v339, %v203
        %vm344 = vcmp.eq.s32.totalorder %v339, %v204
        %vm345 = vcmp.eq.s32.totalorder %v342, %v203
        %vm346 = vcmp.eq.s32.totalorder %v342, %v204
        %v347 = vsel %vm343, 1, 0
        %v348 = vsel %vm344, 1, 0
        %v349 = vsel %vm345, 1, 0
        %v350 = vsel %vm346, 1, 0
        %v351 = vcvt.s32.f32 %v347
        %v352 = vcvt.s32.f32 %v348
        %v353 = vcvt.s32.f32 %v349
        %v354 = vcvt.s32.f32 %v350
        %v355 = vadd.f32 %v333, %v351
        %v356 = vadd.f32 %v334, %v352
        %v357 = vadd.f32 %v335, %v353
        %v358 = vadd.f32 %v336, %v354
        %359 = vset.pattern.permute.xlu0 7
        %360 = vperm.xlu0 %359, %v200
        %v361 = vpop.permute.xlu0 %360
        %362 = vset.pattern.permute.xlu0 7
        %363 = vperm.xlu0 %362, %v201
        %v364 = vpop.permute.xlu0 %363
        %vm365 = vcmp.eq.s32.totalorder %v361, %v203
        %vm366 = vcmp.eq.s32.totalorder %v361, %v204
        %vm367 = vcmp.eq.s32.totalorder %v364, %v203
        %vm368 = vcmp.eq.s32.totalorder %v364, %v204
        %v369 = vsel %vm365, 1, 0
        %v370 = vsel %vm366, 1, 0
        %v371 = vsel %vm367, 1, 0
        %v372 = vsel %vm368, 1, 0
        %v373 = vcvt.s32.f32 %v369
        %v374 = vcvt.s32.f32 %v370
        %v375 = vcvt.s32.f32 %v371
        %v376 = vcvt.s32.f32 %v372
        %v377 = vadd.f32 %v355, %v373
        %v378 = vadd.f32 %v356, %v374
        %v379 = vadd.f32 %v357, %v375
        %v380 = vadd.f32 %v358, %v376
        %381 = vset.pattern.permute.xlu0 8
        %382 = vperm.xlu0 %381, %v200
        %v383 = vpop.permute.xlu0 %382
        %384 = vset.pattern.permute.xlu0 8
        %385 = vperm.xlu0 %384, %v201
        %v386 = vpop.permute.xlu0 %385
        %vm387 = vcmp.eq.s32.totalorder %v383, %v203
        %vm388 = vcmp.eq.s32.totalorder %v383, %v204
        %vm389 = vcmp.eq.s32.totalorder %v386, %v203
        %vm390 = vcmp.eq.s32.totalorder %v386, %v204
        %v391 = vsel %vm387, 1, 0
        %v392 = vsel %vm388, 1, 0
        %v393 = vsel %vm389, 1, 0
        %v394 = vsel %vm390, 1, 0
        %v395 = vcvt.s32.f32 %v391
        %v396 = vcvt.s32.f32 %v392
        %v397 = vcvt.s32.f32 %v393
        %v398 = vcvt.s32.f32 %v394
        %v399 = vadd.f32 %v377, %v395
        %v400 = vadd.f32 %v378, %v396
        %v401 = vadd.f32 %v379, %v397
        %v402 = vadd.f32 %v380, %v398
        %403 = vset.pattern.permute.xlu0 9
        %404 = vperm.xlu0 %403, %v200
        %v405 = vpop.permute.xlu0 %404
        %406 = vset.pattern.permute.xlu0 9
        %407 = vperm.xlu0 %406, %v201
        %v408 = vpop.permute.xlu0 %407
        %vm409 = vcmp.eq.s32.totalorder %v405, %v203
        %vm410 = vcmp.eq.s32.totalorder %v405, %v204
        %vm411 = vcmp.eq.s32.totalorder %v408, %v203
        %vm412 = vcmp.eq.s32.totalorder %v408, %v204
        %v413 = vsel %vm409, 1, 0
        %v414 = vsel %vm410, 1, 0
        %v415 = vsel %vm411, 1, 0
        %v416 = vsel %vm412, 1, 0
        %v417 = vcvt.s32.f32 %v413
        %v418 = vcvt.s32.f32 %v414
        %v419 = vcvt.s32.f32 %v415
        %v420 = vcvt.s32.f32 %v416
        %v421 = vadd.f32 %v399, %v417
        %v422 = vadd.f32 %v400, %v418
        %v423 = vadd.f32 %v401, %v419
        %v424 = vadd.f32 %v402, %v420
        %425 = vset.pattern.permute.xlu0 10
        %426 = vperm.xlu0 %425, %v200
        %v427 = vpop.permute.xlu0 %426
        %428 = vset.pattern.permute.xlu0 10
        %429 = vperm.xlu0 %428, %v201
        %v430 = vpop.permute.xlu0 %429
        %vm431 = vcmp.eq.s32.totalorder %v427, %v203
        %vm432 = vcmp.eq.s32.totalorder %v427, %v204
        %vm433 = vcmp.eq.s32.totalorder %v430, %v203
        %vm434 = vcmp.eq.s32.totalorder %v430, %v204
        %v435 = vsel %vm431, 1, 0
        %v436 = vsel %vm432, 1, 0
        %v437 = vsel %vm433, 1, 0
        %v438 = vsel %vm434, 1, 0
        %v439 = vcvt.s32.f32 %v435
        %v440 = vcvt.s32.f32 %v436
        %v441 = vcvt.s32.f32 %v437
        %v442 = vcvt.s32.f32 %v438
        %v443 = vadd.f32 %v421, %v439
        %v444 = vadd.f32 %v422, %v440
        %v445 = vadd.f32 %v423, %v441
        %v446 = vadd.f32 %v424, %v442
        %447 = vset.pattern.permute.xlu0 11
        %448 = vperm.xlu0 %447, %v200
        %v449 = vpop.permute.xlu0 %448
        %450 = vset.pattern.permute.xlu0 11
        %451 = vperm.xlu0 %450, %v201
        %v452 = vpop.permute.xlu0 %451
        %vm453 = vcmp.eq.s32.totalorder %v449, %v203
        %vm454 = vcmp.eq.s32.totalorder %v449, %v204
        %vm455 = vcmp.eq.s32.totalorder %v452, %v203
        %vm456 = vcmp.eq.s32.totalorder %v452, %v204
        %v457 = vsel %vm453, 1, 0
        %v458 = vsel %vm454, 1, 0
        %v459 = vsel %vm455, 1, 0
        %v460 = vsel %vm456, 1, 0
        %v461 = vcvt.s32.f32 %v457
        %v462 = vcvt.s32.f32 %v458
        %v463 = vcvt.s32.f32 %v459
        %v464 = vcvt.s32.f32 %v460
        %v465 = vadd.f32 %v443, %v461
        %v466 = vadd.f32 %v444, %v462
        %v467 = vadd.f32 %v445, %v463
        %v468 = vadd.f32 %v446, %v464
        %469 = vset.pattern.permute.xlu0 12
        %470 = vperm.xlu0 %469, %v200
        %v471 = vpop.permute.xlu0 %470
        %472 = vset.pattern.permute.xlu0 12
        %473 = vperm.xlu0 %472, %v201
        %v474 = vpop.permute.xlu0 %473
        %vm475 = vcmp.eq.s32.totalorder %v471, %v203
        %vm476 = vcmp.eq.s32.totalorder %v471, %v204
        %vm477 = vcmp.eq.s32.totalorder %v474, %v203
        %vm478 = vcmp.eq.s32.totalorder %v474, %v204
        %v479 = vsel %vm475, 1, 0
        %v480 = vsel %vm476, 1, 0
        %v481 = vsel %vm477, 1, 0
        %v482 = vsel %vm478, 1, 0
        %v483 = vcvt.s32.f32 %v479
        %v484 = vcvt.s32.f32 %v480
        %v485 = vcvt.s32.f32 %v481
        %v486 = vcvt.s32.f32 %v482
        %v487 = vadd.f32 %v465, %v483
        %v488 = vadd.f32 %v466, %v484
        %v489 = vadd.f32 %v467, %v485
        %v490 = vadd.f32 %v468, %v486
        %491 = vset.pattern.permute.xlu0 13
        %492 = vperm.xlu0 %491, %v200
        %v493 = vpop.permute.xlu0 %492
        %494 = vset.pattern.permute.xlu0 13
        %495 = vperm.xlu0 %494, %v201
        %v496 = vpop.permute.xlu0 %495
        %vm497 = vcmp.eq.s32.totalorder %v493, %v203
        %vm498 = vcmp.eq.s32.totalorder %v493, %v204
        %vm499 = vcmp.eq.s32.totalorder %v496, %v203
        %vm500 = vcmp.eq.s32.totalorder %v496, %v204
        %v501 = vsel %vm497, 1, 0
        %v502 = vsel %vm498, 1, 0
        %v503 = vsel %vm499, 1, 0
        %v504 = vsel %vm500, 1, 0
        %v505 = vcvt.s32.f32 %v501
        %v506 = vcvt.s32.f32 %v502
        %v507 = vcvt.s32.f32 %v503
        %v508 = vcvt.s32.f32 %v504
        %v509 = vadd.f32 %v487, %v505
        %v510 = vadd.f32 %v488, %v506
        %v511 = vadd.f32 %v489, %v507
        %v512 = vadd.f32 %v490, %v508
        %513 = vset.pattern.permute.xlu0 14
        %514 = vperm.xlu0 %513, %v200
        %v515 = vpop.permute.xlu0 %514
        %516 = vset.pattern.permute.xlu0 14
        %517 = vperm.xlu0 %516, %v201
        %v518 = vpop.permute.xlu0 %517
        %vm519 = vcmp.eq.s32.totalorder %v515, %v203
        %vm520 = vcmp.eq.s32.totalorder %v515, %v204
        %vm521 = vcmp.eq.s32.totalorder %v518, %v203
        %vm522 = vcmp.eq.s32.totalorder %v518, %v204
        %v523 = vsel %vm519, 1, 0
        %v524 = vsel %vm520, 1, 0
        %v525 = vsel %vm521, 1, 0
        %v526 = vsel %vm522, 1, 0
        %v527 = vcvt.s32.f32 %v523
        %v528 = vcvt.s32.f32 %v524
        %v529 = vcvt.s32.f32 %v525
        %v530 = vcvt.s32.f32 %v526
        %v531 = vadd.f32 %v509, %v527
        %v532 = vadd.f32 %v510, %v528
        %v533 = vadd.f32 %v511, %v529
        %v534 = vadd.f32 %v512, %v530
        %535 = vset.pattern.permute.xlu0 15
        %536 = vperm.xlu0 %535, %v200
        %v537 = vpop.permute.xlu0 %536
        %538 = vset.pattern.permute.xlu0 15
        %539 = vperm.xlu0 %538, %v201
        %v540 = vpop.permute.xlu0 %539
        %vm541 = vcmp.eq.s32.totalorder %v537, %v203
        %vm542 = vcmp.eq.s32.totalorder %v537, %v204
        %vm543 = vcmp.eq.s32.totalorder %v540, %v203
        %vm544 = vcmp.eq.s32.totalorder %v540, %v204
        %v545 = vsel %vm541, 1, 0
        %v546 = vsel %vm542, 1, 0
        %v547 = vsel %vm543, 1, 0
        %v548 = vsel %vm544, 1, 0
        %v549 = vcvt.s32.f32 %v545
        %v550 = vcvt.s32.f32 %v546
        %v551 = vcvt.s32.f32 %v547
        %v552 = vcvt.s32.f32 %v548
        %v553 = vadd.f32 %v531, %v549
        %v554 = vadd.f32 %v532, %v550
        %v555 = vadd.f32 %v533, %v551
        %v556 = vadd.f32 %v534, %v552
        %v557 = vpack.c.bf16 %v555, %v553
        %v558 = vpack.c.bf16 %v556, %v554
        %v559 = vld [vmem:[%s1] sm:$0xf]
        %v560 = vld [vmem:[%s1 + $0x4] sm:$0xf]
        %v561 = vld [vmem:[%s1 + $0x8] sm:$0xf]
        %v562 = vld [vmem:[%s1 + $0xc] sm:$0xf]
        %v563 = vld [vmem:[%s1 + $0x10] sm:$0xf]
        %v564 = vld [vmem:[%s1 + $0x14] sm:$0xf]
        %v565 = vld [vmem:[%s1 + $0x18] sm:$0xf]
        %v566 = vld [vmem:[%s1 + $0x1c] sm:$0xf]
        %v567 = vld [vmem:[%s1 + $0x20] sm:$0xf]
        %v568 = vld [vmem:[%s1 + $0x24] sm:$0xf]
        %v569 = vld [vmem:[%s1 + $0x28] sm:$0xf]
        %v570 = vld [vmem:[%s1 + $0x2c] sm:$0xf]
        %v571 = vld [vmem:[%s1 + $0x30] sm:$0xf]
        %v572 = vld [vmem:[%s1 + $0x34] sm:$0xf]
        %v573 = vld [vmem:[%s1 + $0x38] sm:$0xf]
        %v574 = vld [vmem:[%s1 + $0x3c] sm:$0xf]
        %v575 = vld [vmem:[%s1 + $0x40] sm:$0xf]
        %v576 = vld [vmem:[%s1 + $0x44] sm:$0xf]
        %v577 = vld [vmem:[%s1 + $0x48] sm:$0xf]
        %v578 = vld [vmem:[%s1 + $0x4c] sm:$0xf]
        %v579 = vld [vmem:[%s1 + $0x50] sm:$0xf]
        %v580 = vld [vmem:[%s1 + $0x54] sm:$0xf]
        %v581 = vld [vmem:[%s1 + $0x58] sm:$0xf]
        %v582 = vld [vmem:[%s1 + $0x5c] sm:$0xf]
        %v583 = vld [vmem:[%s1 + $0x60] sm:$0xf]
        %v584 = vld [vmem:[%s1 + $0x64] sm:$0xf]
        %v585 = vld [vmem:[%s1 + $0x68] sm:$0xf]
        %v586 = vld [vmem:[%s1 + $0x6c] sm:$0xf]
        %v587 = vld [vmem:[%s1 + $0x70] sm:$0xf]
        %v588 = vld [vmem:[%s1 + $0x74] sm:$0xf]
        %v589 = vld [vmem:[%s1 + $0x78] sm:$0xf]
        %v590 = vld [vmem:[%s1 + $0x7c] sm:$0xf]
        %v623 = vunpack.c.l.b16 %v559
        %v624 = vunpack.c.l.b16 %v560
        %v625 = vunpack.c.l.b16 %v561
        %v626 = vunpack.c.l.b16 %v562
        %v627 = vunpack.c.l.b16 %v563
        %v628 = vunpack.c.l.b16 %v564
        %v629 = vunpack.c.l.b16 %v565
        %v630 = vunpack.c.l.b16 %v566
        %v631 = vunpack.c.l.b16 %v567
        %v632 = vunpack.c.l.b16 %v568
        %v633 = vunpack.c.l.b16 %v569
        %v634 = vunpack.c.l.b16 %v570
        %v635 = vunpack.c.l.b16 %v571
        %v636 = vunpack.c.l.b16 %v572
        %v637 = vunpack.c.l.b16 %v573
        %v638 = vunpack.c.l.b16 %v574
        %v639 = vunpack.c.l.b16 %v575
        %v640 = vunpack.c.l.b16 %v576
        %v641 = vunpack.c.l.b16 %v577
        %v642 = vunpack.c.l.b16 %v578
        %v643 = vunpack.c.l.b16 %v579
        %v644 = vunpack.c.l.b16 %v580
        %v645 = vunpack.c.l.b16 %v581
        %v646 = vunpack.c.l.b16 %v582
        %v647 = vunpack.c.l.b16 %v583
        %v648 = vunpack.c.l.b16 %v584
        %v649 = vunpack.c.l.b16 %v585
        %v650 = vunpack.c.l.b16 %v586
        %v651 = vunpack.c.l.b16 %v587
        %v652 = vunpack.c.l.b16 %v588
        %v653 = vunpack.c.l.b16 %v589
        %v654 = vunpack.c.l.b16 %v590
        %v655 = vpack.c.b16 %v624, %v623
        %v656 = vpack.c.b16 %v626, %v625
        %v657 = vpack.c.b16 %v628, %v627
        %v658 = vpack.c.b16 %v630, %v629
        %v659 = vpack.c.b16 %v632, %v631
        %v660 = vpack.c.b16 %v634, %v633
        %v661 = vpack.c.b16 %v636, %v635
        %v662 = vpack.c.b16 %v638, %v637
        %v663 = vpack.c.b16 %v640, %v639
        %v664 = vpack.c.b16 %v642, %v641
        %v665 = vpack.c.b16 %v644, %v643
        %v666 = vpack.c.b16 %v646, %v645
        %v667 = vpack.c.b16 %v648, %v647
        %v668 = vpack.c.b16 %v650, %v649
        %v669 = vpack.c.b16 %v652, %v651
        %v670 = vpack.c.b16 %v654, %v653
        %687 = vmatpush.bf16.msra.mxu0 %v662
        %688 = vmatpush.bf16.msra.mxu0 %v661
        %689 = vmatpush.bf16.msra.mxu0 %v660
        %690 = vmatpush.bf16.msra.mxu0 %v659
        %691 = vmatpush.bf16.msra.mxu0 %v658
        %692 = vmatpush.bf16.msra.mxu0 %v657
        %693 = vmatpush.bf16.msra.mxu0 %v656
        %694 = vmatpush.bf16.msra.mxu0 %v655
        %695 = vmatmul.bf16.gmra.mxu0 %v557
        %v696 = vpop.f32.mrf.mxu0
        %v697 = vadd.f32 0.0, %v696
        %v698 = vpop.f32.mrf.mxu0
        %v699 = vadd.f32 0.0, %v698
        %700 = vdwg.mxu0
        %701 = vmatpush.bf16.msra.mxu0 %v670
        %702 = vmatpush.bf16.msra.mxu0 %v669
        %703 = vmatpush.bf16.msra.mxu0 %v668
        %704 = vmatpush.bf16.msra.mxu0 %v667
        %705 = vmatpush.bf16.msra.mxu0 %v666
        %706 = vmatpush.bf16.msra.mxu0 %v665
        %707 = vmatpush.bf16.msra.mxu0 %v664
        %708 = vmatpush.bf16.msra.mxu0 %v663
        %709 = vmatmul.bf16.gmra.mxu0 %v558
        %v710 = vpop.f32.mrf.mxu0
        %v711 = vadd.f32 %v697, %v710
        %v712 = vpop.f32.mrf.mxu0
        %v713 = vadd.f32 %v699, %v712
        %714 = vdwg.mxu0
        %v715 = vld [vmem:[%s3] sm:$0xff]
        %v716 = vpack.c.bf16 %v713, %v711
        %v717 = vld [vmem:[%s2] sm:$0xf]
        %v718 = vld [vmem:[%s2 + $0x4] sm:$0xf]
        %v719 = vld [vmem:[%s2 + $0x8] sm:$0xf]
        %v720 = vld [vmem:[%s2 + $0xc] sm:$0xf]
        %v721 = vld [vmem:[%s2 + $0x10] sm:$0xf]
        %v722 = vld [vmem:[%s2 + $0x14] sm:$0xf]
        %v723 = vld [vmem:[%s2 + $0x18] sm:$0xf]
        %v724 = vld [vmem:[%s2 + $0x1c] sm:$0xf]
        %v725 = vperm.slane %v715, 0
        %v734 = vunpack.c.l.b16 %v717
        %v735 = vunpack.c.l.b16 %v718
        %v736 = vunpack.c.l.b16 %v719
        %v737 = vunpack.c.l.b16 %v720
        %v738 = vunpack.c.l.b16 %v721
        %v739 = vunpack.c.l.b16 %v722
        %v740 = vunpack.c.l.b16 %v723
        %v741 = vunpack.c.l.b16 %v724
        %v742 = vpack.c.b16 %v735, %v734
        %v743 = vpack.c.b16 %v737, %v736
        %v744 = vpack.c.b16 %v739, %v738
        %v745 = vpack.c.b16 %v741, %v740
        %vm750 = vcmask 523264
        %v752 = vsel %vm750, %v716, 0
        %754 = vmatpush.bf16.msra.mxu0 0
        %755 = vmatpush.bf16.msra.mxu0 0
        %756 = vmatpush.bf16.msra.mxu0 0
        %757 = vmatpush.bf16.msra.mxu0 0
        %758 = vmatpush.bf16.msra.mxu0 %v745
        %759 = vmatpush.bf16.msra.mxu0 %v744
        %760 = vmatpush.bf16.msra.mxu0 %v743
        %761 = vmatpush.bf16.msra.mxu0 %v742
        %762 = vmatmul.bf16.gmra.mxu0 %v752
        %v763 = vpop.f32.mrf.mxu0
        %v764 = vadd.f32 %v725, %v763
        %v765 = vpop.f32.mrf.mxu0
        %v766 = vadd.f32 %v725, %v765
        %767 = vdwg.mxu0
        %v768 = vpack.c.bf16 %v766, %v764
        %v769 = vld [vmem:[%s2 + $0x20] sm:$0xf]
        %v770 = vld [vmem:[%s2 + $0x24] sm:$0xf]
        %v771 = vld [vmem:[%s2 + $0x28] sm:$0xf]
        %v772 = vld [vmem:[%s2 + $0x2c] sm:$0xf]
        %v773 = vld [vmem:[%s2 + $0x30] sm:$0xf]
        %v774 = vld [vmem:[%s2 + $0x34] sm:$0xf]
        %v775 = vld [vmem:[%s2 + $0x38] sm:$0xf]
        %v776 = vld [vmem:[%s2 + $0x3c] sm:$0xf]
        %v777 = vld [vmem:[%s2 + $0x40] sm:$0xf]
        %v778 = vld [vmem:[%s2 + $0x44] sm:$0xf]
        %v779 = vld [vmem:[%s2 + $0x48] sm:$0xf]
        %v780 = vld [vmem:[%s2 + $0x4c] sm:$0xf]
        %v781 = vld [vmem:[%s2 + $0x50] sm:$0xf]
        %v782 = vld [vmem:[%s2 + $0x54] sm:$0xf]
        %v783 = vld [vmem:[%s2 + $0x58] sm:$0xf]
        %v784 = vld [vmem:[%s2 + $0x5c] sm:$0xf]
        %v785 = vperm.slane %v715, 1
        %v802 = vunpack.c.l.b16 %v769
        %v803 = vunpack.c.l.b16 %v770
        %v804 = vunpack.c.l.b16 %v771
        %v805 = vunpack.c.l.b16 %v772
        %v806 = vunpack.c.l.b16 %v773
        %v807 = vunpack.c.l.b16 %v774
        %v808 = vunpack.c.l.b16 %v775
        %v809 = vunpack.c.l.b16 %v776
        %v810 = vunpack.c.l.b16 %v777
        %v811 = vunpack.c.l.b16 %v778
        %v812 = vunpack.c.l.b16 %v779
        %v813 = vunpack.c.l.b16 %v780
        %v814 = vunpack.c.l.b16 %v781
        %v815 = vunpack.c.l.b16 %v782
        %v816 = vunpack.c.l.b16 %v783
        %v817 = vunpack.c.l.b16 %v784
        %v818 = vpack.c.b16 %v803, %v802
        %v819 = vpack.c.b16 %v805, %v804
        %v820 = vpack.c.b16 %v807, %v806
        %v821 = vpack.c.b16 %v809, %v808
        %v822 = vpack.c.b16 %v811, %v810
        %v823 = vpack.c.b16 %v813, %v812
        %v824 = vpack.c.b16 %v815, %v814
        %v825 = vpack.c.b16 %v817, %v816
        %834 = vmatpush.bf16.msra.mxu0 %v825
        %835 = vmatpush.bf16.msra.mxu0 %v824
        %836 = vmatpush.bf16.msra.mxu0 %v823
        %837 = vmatpush.bf16.msra.mxu0 %v822
        %838 = vmatpush.bf16.msra.mxu0 %v821
        %839 = vmatpush.bf16.msra.mxu0 %v820
        %840 = vmatpush.bf16.msra.mxu0 %v819
        %841 = vmatpush.bf16.msra.mxu0 %v818
        %842 = vmatmul.bf16.gmra.mxu0 %v768
        %v843 = vpop.f32.mrf.mxu0
        %v844 = vadd.f32 %v785, %v843
        %v845 = vpop.f32.mrf.mxu0
        %v846 = vadd.f32 %v785, %v845
        %847 = vdwg.mxu0
        %v848 = vpack.c.bf16 %v846, %v844
        %v849 = vld [vmem:[%s2 + $0x60] sm:$0xf]
        %v850 = vld [vmem:[%s2 + $0x64] sm:$0xf]
        %v851 = vld [vmem:[%s2 + $0x68] sm:$0xf]
        %v852 = vld [vmem:[%s2 + $0x6c] sm:$0xf]
        %v853 = vld [vmem:[%s2 + $0x70] sm:$0xf]
        %v854 = vld [vmem:[%s2 + $0x74] sm:$0xf]
        %v855 = vld [vmem:[%s2 + $0x78] sm:$0xf]
        %v856 = vld [vmem:[%s2 + $0x7c] sm:$0xf]
        %v857 = vld [vmem:[%s2 + $0x80] sm:$0xf]
        %v858 = vld [vmem:[%s2 + $0x84] sm:$0xf]
        %v859 = vld [vmem:[%s2 + $0x88] sm:$0xf]
        %v860 = vld [vmem:[%s2 + $0x8c] sm:$0xf]
        %v861 = vld [vmem:[%s2 + $0x90] sm:$0xf]
        %v862 = vld [vmem:[%s2 + $0x94] sm:$0xf]
        %v863 = vld [vmem:[%s2 + $0x98] sm:$0xf]
        %v864 = vld [vmem:[%s2 + $0x9c] sm:$0xf]
        %v865 = vperm.slane %v715, 2
        %v882 = vunpack.c.l.b16 %v849
        %v883 = vunpack.c.l.b16 %v850
        %v884 = vunpack.c.l.b16 %v851
        %v885 = vunpack.c.l.b16 %v852
        %v886 = vunpack.c.l.b16 %v853
        %v887 = vunpack.c.l.b16 %v854
        %v888 = vunpack.c.l.b16 %v855
        %v889 = vunpack.c.l.b16 %v856
        %v890 = vunpack.c.l.b16 %v857
        %v891 = vunpack.c.l.b16 %v858
        %v892 = vunpack.c.l.b16 %v859
        %v893 = vunpack.c.l.b16 %v860
        %v894 = vunpack.c.l.b16 %v861
        %v895 = vunpack.c.l.b16 %v862
        %v896 = vunpack.c.l.b16 %v863
        %v897 = vunpack.c.l.b16 %v864
        %v898 = vpack.c.b16 %v883, %v882
        %v899 = vpack.c.b16 %v885, %v884
        %v900 = vpack.c.b16 %v887, %v886
        %v901 = vpack.c.b16 %v889, %v888
        %v902 = vpack.c.b16 %v891, %v890
        %v903 = vpack.c.b16 %v893, %v892
        %v904 = vpack.c.b16 %v895, %v894
        %v905 = vpack.c.b16 %v897, %v896
        %914 = vmatpush.bf16.msra.mxu0 %v905
        %915 = vmatpush.bf16.msra.mxu0 %v904
        %916 = vmatpush.bf16.msra.mxu0 %v903
        %917 = vmatpush.bf16.msra.mxu0 %v902
        %918 = vmatpush.bf16.msra.mxu0 %v901
        %919 = vmatpush.bf16.msra.mxu0 %v900
        %920 = vmatpush.bf16.msra.mxu0 %v899
        %921 = vmatpush.bf16.msra.mxu0 %v898
        %922 = vmatmul.bf16.gmra.mxu0 %v848
        %v923 = vpop.f32.mrf.mxu0
        %v924 = vadd.f32 %v865, %v923
        %v925 = vpop.f32.mrf.mxu0
        %v926 = vadd.f32 %v865, %v925
        %927 = vdwg.mxu0
        %928 = vst [vmem:[%s191] sm:$0xff] %v924
        %929 = vst [vmem:[%s191 + $0x8] sm:$0xff] %v926
        %s930 = sand.u32 %s115, 1
        %s931 = scalar_lea.sflag [#allocation3], %s930
        %s932 = sand.u32 %s115, 1
        %s933 = smul.addr %s932, 16
        %s934 = scalar_lea.vmem [#allocation2], %s933
        // Predicated region
        $region37: #{tpu_custom_call.1} parent=35 // pred_check
          %p935 = pneg %p125
        $region38: #{tpu_custom_call.1} parent=35 // pred_check_branch
          %937 = sbr.rel (%p935) target = $region40
        $region39: #{tpu_custom_call.1} parent=35 // pred_region
          %s938 = smul.u32 2, %s18
          %940 = vsyncadd %s931, 0
          %s941 = smul.addr %s938, 8
          %s942 = scalar_lea.hbm %s4, %s941
          %s943 = sshll.u32 %s934, 4
          %s944 = int_to_ptr.vmem [resolvable:$true] %s943
          %s945 = sshll.u32 %s942, 4
          %s946 = int_to_ptr.hbm [resolvable:$true] %s945
          %951 = dma.vmem_to_hbm [thread:$0]  %s944, 256, %s946, %s931, 128, 128, 8
        $region40: #{tpu_custom_call.1} parent=35 // pred_fallthru
          _
      $region36: #{tpu_custom_call.1} parent=5 // pred_fallthru
        _
      %p952 = scmp.le.s32.totalorder 2, %s13
      // Predicated region
      $region41: #{tpu_custom_call.1} parent=5 // pred_check
        %p953 = pneg %p952
      $region42: #{tpu_custom_call.1} parent=5 // pred_check_branch
        %955 = sbr.rel (%p953) target = $region44
      $region43: #{tpu_custom_call.1} parent=5 // pred_region
        %s956 = ssub.s32 %s13, 2
        // Predicated region
        $region45: #{tpu_custom_call.1} parent=43 // pred_check
          %p957 = pneg %p131
        $region46: #{tpu_custom_call.1} parent=43 // pred_check_branch
          %959 = sbr.rel (%p957) target = $region48
        $region47: #{tpu_custom_call.1} parent=43 // pred_region
          %s960 = sand.u32 %s116, 1
          %s961 = scalar_lea.sflag [#allocation3], %s960
          %s962 = sand.u32 %s116, 1
          %s963 = smul.addr %s962, 16
          %s964 = scalar_lea.vmem [#allocation2], %s963
          %966 = dma.done %s961, 256
        $region48: #{tpu_custom_call.1} parent=43 // pred_fallthru
          _
      $region44: #{tpu_custom_call.1} parent=5 // pred_fallthru
        _
    $region6: #{tpu_custom_call.1} parent=1 // loop_footer
      %s17 = sadd.s32 1, %s13
    $region7: #{tpu_custom_call.1} parent=1 // loop_footer_branch
      %12 = sbr.rel target = $region3
    $region8: #{tpu_custom_call.1} parent=1 // loop_exit
      _
    %967 = vsyncpa [#allocation3], 1
    %s968 = scalar_lea.sflag [#allocation3], 1
    %969 = vsyncpa %s968, 1

</llo_original>
